<compile_context>
chip_gen: v6e
topology: v6e:2x2x1
jax: 0.10.0
libtpu: 0.0.40
codegen_flags: <defaults>
</compile_context>

<pallas_src>
import functools

import jax
import jax.numpy as jnp
from jax.experimental import pallas as pl
from jax.experimental.pallas import tpu as pltpu


def _round_up(x, m):
    return (x + m - 1) // m * m


def _log_softmax_masked(y, n_out):
    """Numerically stable log_softmax over the last dim; masks padded columns."""
    n_padded = y.shape[-1]
    if n_padded != n_out:
        col = jax.lax.broadcasted_iota(jnp.int32, y.shape, 1)
        y = jnp.where(col < n_out, y, -jnp.inf)
    m = jnp.max(y, axis=-1, keepdims=True)
    z = y - m
    lse = jnp.log(jnp.sum(jnp.exp(z), axis=-1, keepdims=True))
    return z - lse


def _classifier_kernel_single_k(x_ref, w_ref, o_ref, *, n_out):
    # Fast path: whole n_in contraction in one MXU call, no scratch, no phase
    # gates.  x_ref: (TB, Kp) bf16   w_ref: (Kp, Np) bf16   o_ref: (TB, Np) f32
    y = jnp.dot(x_ref[...], w_ref[...], preferred_element_type=jnp.float32)
    o_ref[...] = _log_softmax_masked(y, n_out).astype(o_ref.dtype)


def _classifier_kernel_multi_k(x_ref, w_ref, o_ref, acc_ref, *, n_out):
    # x_ref: (TB, TK) bf16   w_ref: (TK, Np) bf16
    # o_ref: (TB, Np) f32    acc_ref: (TB, Np) f32 scratch
    k = pl.program_id(1)

    @pl.when(k == 0)
    def _():
        acc_ref[...] = jnp.zeros_like(acc_ref)

    # MXU matmul: bf16 inputs, f32 accumulation.  No transpose in-kernel.
    acc_ref[...] += jnp.dot(
        x_ref[...], w_ref[...], preferred_element_type=jnp.float32
    )

    @pl.when(k == pl.num_programs(1) - 1)
    def _():
        o_ref[...] = _log_softmax_masked(acc_ref[...], n_out).astype(o_ref.dtype)


def classifier_forward(x, weight, *, tb=256, tk=512, use_bf16=True):
    """x: (B, n_in), weight: (n_out, n_in) (nn.Linear layout) -> (B, n_out) log-probs (f32)."""
    B, n_in = x.shape
    n_out, n_in_w = weight.shape
    assert n_in == n_in_w

    # Pre-transpose the weight once outside the kernel: (n_in, n_out).
    w_t = weight.T

    # Tile sizes: multiples of (8, 128); clamp for small problems.
    TB = min(tb, _round_up(B, 8))
    TK = min(tk, _round_up(n_in, 128))
    Np = _round_up(n_out, 128)

    compute_dtype = jnp.bfloat16 if use_bf16 else jnp.float32
    itemsize = 2 if use_bf16 else 4

    # Keep the double-buffered weight tile comfortably inside VMEM
    # (v7x has 64 MiB per TC; leave room for x / out / accumulator buffers).
    while TK > 128 and 2 * TK * Np * itemsize > (16 << 20):
        TK //= 2

    Bp = _round_up(B, TB)
    Kp = _round_up(n_in, TK)

    # Conditional padding: aligned shapes pay no extra copies.
    x_p = x if (Bp == B and Kp == n_in) else jnp.pad(x, ((0, Bp - B), (0, Kp - n_in)))
    w_p = w_t if (Kp == n_in and Np == n_out) else jnp.pad(
        w_t, ((0, Kp - n_in), (0, Np - n_out))
    )
    x_p = x_p.astype(compute_dtype)
    w_p = w_p.astype(compute_dtype)

    single_k = Kp == TK

    if single_k:
        kernel = functools.partial(_classifier_kernel_single_k, n_out=n_out)
        grid = (Bp // TB,)
        in_specs = [
            pl.BlockSpec((TB, Kp), lambda i: (i, 0)),
            pl.BlockSpec((Kp, Np), lambda i: (0, 0)),
        ]
        out_specs = pl.BlockSpec((TB, Np), lambda i: (i, 0))
        scratch_shapes = []
        dim_sem = ("parallel",)
    else:
        kernel = functools.partial(_classifier_kernel_multi_k, n_out=n_out)
        grid = (Bp // TB, Kp // TK)
        in_specs = [
            pl.BlockSpec((TB, TK), lambda i, k: (i, k)),
            pl.BlockSpec((TK, Np), lambda i, k: (k, 0)),
        ]
        out_specs = pl.BlockSpec((TB, Np), lambda i, k: (i, 0))
        scratch_shapes = [pltpu.VMEM((TB, Np), jnp.float32)]
        dim_sem = ("parallel", "arbitrary")

    out = pl.pallas_call(
        kernel,
        out_shape=jax.ShapeDtypeStruct((Bp, Np), jnp.float32),
        grid_spec=pltpu.PrefetchScalarGridSpec(
            num_scalar_prefetch=0,
            grid=grid,
            in_specs=in_specs,
            out_specs=out_specs,
            scratch_shapes=scratch_shapes,
        ),
        compiler_params=pltpu.CompilerParams(
            dimension_semantics=dim_sem,
            vmem_limit_bytes=48 * 1024 * 1024,
        ),
    )(x_p, w_p)

    if Bp == B and Np == n_out:
        return out
    return out[:B, :n_out]


def xavier_uniform(key, n_out, n_in):
    # Matches nn.init.xavier_uniform_ for a (n_out, n_in) Linear weight.
    bound = jnp.sqrt(6.0 / (n_in + n_out))
    return jax.random.uniform(
        key, (n_out, n_in), dtype=jnp.float32, minval=-bound, maxval=bound
    )


if __name__ == "__main__":
    key = jax.random.PRNGKey(0)
    k_x, k_w = jax.random.split(key)

    # Small shapes consistent with the module: Classifier(n_in=32, n_out=16), batch=8.
    batch, n_in, n_out = 8, 32, 16
    x = jax.random.normal(k_x, (batch, n_in), dtype=jnp.float32)
    weight = xavier_uniform(k_w, n_out, n_in)

    out = classifier_forward(x, weight)
    jax.block_until_ready(out)

    # Reference with the same compute recipe (bf16 matmul inputs, f32 accum + softmax).
    ref_bf16 = jax.nn.log_softmax(
        jnp.dot(
            x.astype(jnp.bfloat16),
            weight.T.astype(jnp.bfloat16),
            preferred_element_type=jnp.float32,
        ),
        axis=-1,
    )
    assert jnp.allclose(out, ref_bf16, atol=1e-4, rtol=1e-4), "mismatch vs bf16 reference"

    # Loose check against the full-f32 reference (bf16 matmul inputs only).
    ref_f32 = jax.nn.log_softmax(x @ weight.T, axis=-1)
    assert jnp.allclose(out, ref_f32, atol=3e-2, rtol=3e-2), "mismatch vs f32 reference"

    print("KERNEL_OK")
</pallas_src>

<mosaic_0001>
module attributes {stable_mosaic.version = 11 : i64} {
  func.func @_classifier_kernel_single_k(%arg0: i32, %arg1: memref<8x128xbf16, #tpu.memory_space<vmem>>, %arg2: memref<128x128xbf16, #tpu.memory_space<vmem>>, %arg3: memref<8x128xf32, #tpu.memory_space<vmem>>) attributes {dimension_semantics = [#tpu.dimension_semantics<parallel>], iteration_bounds = array<i64: 1>, scalar_prefetch = 0 : i64, scratch_operands = 0 : i64, tpu.core_type = #tpu.core_type<tc>, window_params = [{transform_indices = @transform_0, window_bounds = array<i64: 8, 128>}, {pipeline_mode = #tpu.pipeline_mode<synchronous>, transform_indices = @transform_1, window_bounds = array<i64: 128, 128>}, {transform_indices = @transform_2, window_bounds = array<i64: 8, 128>}]} {
    %c0 = arith.constant 0 : index
    %c0_0 = arith.constant 0 : index
    %0 = vector.load %arg1[%c0, %c0_0] : memref<8x128xbf16, #tpu.memory_space<vmem>>, vector<8x128xbf16>
    %c0_1 = arith.constant 0 : index
    %c0_2 = arith.constant 0 : index
    %1 = vector.load %arg2[%c0_1, %c0_2] : memref<128x128xbf16, #tpu.memory_space<vmem>>, vector<128x128xbf16>
    %cst = arith.constant dense<0.000000e+00> : vector<8x128xf32>
    %2 = tpu.matmul %0, %1, %cst {dimension_numbers = #tpu.dot_dimension_numbers<[1], [0], [0], [1], [0, 0, 1, 1], [], []>} : vector<8x128xbf16>, vector<128x128xbf16>, vector<8x128xf32> -> vector<8x128xf32>
    %3 = tpu.iota {dimensions = array<i32: 1>} : vector<8x128xi32>
    %c16_i32 = arith.constant 16 : i32
    %4 = vector.broadcast %c16_i32 : i32 to vector<8x128xi32>
    %5 = arith.cmpi slt, %3, %4 : vector<8x128xi32>
    %cst_3 = arith.constant 0xFF800000 : f32
    %6 = vector.broadcast %cst_3 : f32 to vector<8x128xf32>
    %7 = arith.select %5, %2, %6 : vector<8x128xi1>, vector<8x128xf32>
    %cst_4 = arith.constant dense<0xFF800000> : vector<8xf32>
    %8 = vector.multi_reduction <maximumf>, %7, %cst_4 [1] : vector<8x128xf32> to vector<8xf32>
    %9 = vector.shape_cast %8 : vector<8xf32> to vector<8x1xf32>
    %10 = vector.broadcast %9 : vector<8x1xf32> to vector<8x128xf32>
    %11 = arith.subf %7, %10 : vector<8x128xf32>
    %12 = math.exp %11 : vector<8x128xf32>
    %cst_5 = arith.constant dense<0.000000e+00> : vector<8xf32>
    %13 = vector.multi_reduction <add>, %12, %cst_5 [1] : vector<8x128xf32> to vector<8xf32>
    %14 = vector.shape_cast %13 : vector<8xf32> to vector<8x1xf32>
    %15 = math.log %14 : vector<8x1xf32>
    %16 = vector.broadcast %15 : vector<8x1xf32> to vector<8x128xf32>
    %17 = arith.subf %11, %16 : vector<8x128xf32>
    %c0_6 = arith.constant 0 : index
    %c0_7 = arith.constant 0 : index
    %18 = vector.load %arg3[%c0_6, %c0_7] : memref<8x128xf32, #tpu.memory_space<vmem>>, vector<8x128xf32>
    tpu.vector_store %arg3[%c0_6, %c0_7], %17 {strides = array<i32>} : memref<8x128xf32, #tpu.memory_space<vmem>>, vector<8x128xf32>,
    return
  }
  func.func @transform_0(%arg0: i32) -> (i32, i32) {
    %c0_i32 = arith.constant 0 : i32
    %c0_i32_0 = arith.constant 0 : i32
    return %arg0, %c0_i32 : i32, i32
  }
  func.func @transform_1(%arg0: i32) -> (i32, i32) {
    %c0_i32 = arith.constant 0 : i32
    %c0_i32_0 = arith.constant 0 : i32
    %c0_i32_1 = arith.constant 0 : i32
    return %c0_i32, %c0_i32_0 : i32, i32
  }
  func.func @transform_2(%arg0: i32) -> (i32, i32) {
    %c0_i32 = arith.constant 0 : i32
    %c0_i32_0 = arith.constant 0 : i32
    return %arg0, %c0_i32 : i32, i32
  }
}

</mosaic_0001>

<llo_original>
// kernel: tpu_custom_call.1
$region0: #{tpu_custom_call.1}
  #allocation0 [shape = 'u32[]', space=smem, size = 0x4, offset = 0x4, fixed_abs, tag = 'smem constant byte address 0x4 - core index']
  #allocation1 [shape = 'u32[144,128]{1,0:T(1,128)}', space=vmem, size = 0x12000, scoped, tag = 'internal scratch']
  %s0 = inlined_call_operand.hbm [shape: bf16[8,128], index: 0, kind: input, shape index: {}]
  %s1 = inlined_call_operand.hbm [shape: bf16[128,128], index: 1, kind: input, shape index: {}]
  %s2 = inlined_call_operand.hbm [shape: f32[8,128], index: 2, kind: output, shape index: {}]
  %s3 = sld [smem:[#allocation0]]
  $region26: #{tpu_custom_call.1} parent=0
    _
  %s5 = ssub.s32 1, %s3
  %s6 = scalar_select 0, %s5, %s3
  $region1: #{tpu_custom_call.1} parent=0
    #allocation2 [shape = 'u8[2048]{0}', space=vmem, size = 0x800, scoped, tag = 'input window, operand 0, single buffered']
    #allocation3 [shape = 's32[1]{0}', space=sflag, size = 0x4, scoped, tag = 'scoped memory for tpu_custom_call.1']
    #allocation4 [shape = 's32[1]{0}', space=sflag, size = 0x4, scoped, tag = 'scoped memory for tpu_custom_call.1']
    #allocation5 [shape = 'u8[32768]{0}', space=vmem, size = 0x8000, scoped, tag = 'input window, operand 1, single buffered']
    #allocation6 [shape = 's32[1]{0}', space=sflag, size = 0x4, scoped, tag = 'scoped memory for tpu_custom_call.1']
    #allocation7 [shape = 'u8[4096]{0}', space=vmem, size = 0x1000, scoped, tag = 'output window, operand 0, single buffered']
    %7 = vsyncpa [#allocation3], 0
    %8 = vsyncpa [#allocation6], 0
    %9 = vsyncpa [#allocation4], 0
    // Predicated region
    $region2: #{tpu_custom_call.1} parent=1 // pred_check
      _
    $region3: #{tpu_custom_call.1} parent=1 // pred_check_branch
      %11 = sbr.rel (0) target = $region5
    $region4: #{tpu_custom_call.1} parent=1 // pred_region
      %s13 = ssub.s32 64, 64
      %14 = vsyncadd [#allocation3], %s13
      %s16 = sshll.u32 [#allocation2], 4
      %s17 = int_to_ptr.vmem [resolvable:$true] %s16
      %19 = dma.hbm_to_vmem [thread:$0]  %s0, 64, %s17, [#allocation3]
    $region5: #{tpu_custom_call.1} parent=1 // pred_fallthru
      _
    // Predicated region
    $region6: #{tpu_custom_call.1} parent=1 // pred_check
      _
    $region7: #{tpu_custom_call.1} parent=1 // pred_check_branch
      %21 = sbr.rel (0) target = $region9
    $region8: #{tpu_custom_call.1} parent=1 // pred_region
      %s23 = ssub.s32 1024, 1024
      %24 = vsyncadd [#allocation6], %s23
      %s25 = sshll.u32 [#allocation5], 4
      %s26 = int_to_ptr.vmem [resolvable:$true] %s25
      %31 = dma.hbm_to_vmem [thread:$0]  %s1, 1024, %s26, [#allocation6], 64, 64, 4
    $region9: #{tpu_custom_call.1} parent=1 // pred_fallthru
      _
    // Predicated region
    $region10: #{tpu_custom_call.1} parent=1 // pred_check
      _
    $region11: #{tpu_custom_call.1} parent=1 // pred_check_branch
      %33 = sbr.rel (0) target = $region13
    $region12: #{tpu_custom_call.1} parent=1 // pred_region
      %34 = dma.done [#allocation3], 64
    $region13: #{tpu_custom_call.1} parent=1 // pred_fallthru
      _
    // Predicated region
    $region14: #{tpu_custom_call.1} parent=1 // pred_check
      _
    $region15: #{tpu_custom_call.1} parent=1 // pred_check_branch
      %36 = sbr.rel (0) target = $region17
    $region16: #{tpu_custom_call.1} parent=1 // pred_region
      %37 = dma.done [#allocation6], 1024
    $region17: #{tpu_custom_call.1} parent=1 // pred_fallthru
      _
    %v39 = vld [vmem:[#allocation2] sm:$0xf]
    %v40 = vld [vmem:[#allocation5] sm:$0xf]
    %v41 = vld [vmem:[#allocation5 + $0x4] sm:$0xf]
    %v42 = vld [vmem:[#allocation5 + $0x8] sm:$0xf]
    %v43 = vld [vmem:[#allocation5 + $0xc] sm:$0xf]
    %v44 = vld [vmem:[#allocation5 + $0x10] sm:$0xf]
    %v45 = vld [vmem:[#allocation5 + $0x14] sm:$0xf]
    %v46 = vld [vmem:[#allocation5 + $0x18] sm:$0xf]
    %v47 = vld [vmem:[#allocation5 + $0x1c] sm:$0xf]
    %v48 = vld [vmem:[#allocation5 + $0x20] sm:$0xf]
    %v49 = vld [vmem:[#allocation5 + $0x24] sm:$0xf]
    %v50 = vld [vmem:[#allocation5 + $0x28] sm:$0xf]
    %v51 = vld [vmem:[#allocation5 + $0x2c] sm:$0xf]
    %v52 = vld [vmem:[#allocation5 + $0x30] sm:$0xf]
    %v53 = vld [vmem:[#allocation5 + $0x34] sm:$0xf]
    %v54 = vld [vmem:[#allocation5 + $0x38] sm:$0xf]
    %v55 = vld [vmem:[#allocation5 + $0x3c] sm:$0xf]
    %v72 = vunpack.c.l.b16 %v40
    %v73 = vunpack.c.l.b16 %v41
    %v74 = vunpack.c.l.b16 %v42
    %v75 = vunpack.c.l.b16 %v43
    %v76 = vunpack.c.l.b16 %v44
    %v77 = vunpack.c.l.b16 %v45
    %v78 = vunpack.c.l.b16 %v46
    %v79 = vunpack.c.l.b16 %v47
    %v80 = vunpack.c.l.b16 %v48
    %v81 = vunpack.c.l.b16 %v49
    %v82 = vunpack.c.l.b16 %v50
    %v83 = vunpack.c.l.b16 %v51
    %v84 = vunpack.c.l.b16 %v52
    %v85 = vunpack.c.l.b16 %v53
    %v86 = vunpack.c.l.b16 %v54
    %v87 = vunpack.c.l.b16 %v55
    %v88 = vpack.c.b16 %v73, %v72
    %v89 = vpack.c.b16 %v75, %v74
    %v90 = vpack.c.b16 %v77, %v76
    %v91 = vpack.c.b16 %v79, %v78
    %v92 = vpack.c.b16 %v81, %v80
    %v93 = vpack.c.b16 %v83, %v82
    %v94 = vpack.c.b16 %v85, %v84
    %v95 = vpack.c.b16 %v87, %v86
    %104 = vmatprep.subr.bf16.mxu0 0
    %105 = vmatpush1.bf16.msra.mxu0 %v95
    %106 = vmatprep.subr.bf16.mxu0 0
    %107 = vmatpush1.bf16.msra.mxu0 %v94
    %108 = vmatprep.subr.bf16.mxu0 0
    %109 = vmatpush1.bf16.msra.mxu0 %v93
    %110 = vmatprep.subr.bf16.mxu0 0
    %111 = vmatpush1.bf16.msra.mxu0 %v92
    %112 = vmatprep.subr.bf16.mxu0 0
    %113 = vmatpush1.bf16.msra.mxu0 %v91
    %114 = vmatprep.subr.bf16.mxu0 0
    %115 = vmatpush1.bf16.msra.mxu0 %v90
    %116 = vmatprep.subr.bf16.mxu0 0
    %117 = vmatpush1.bf16.msra.mxu0 %v89
    %118 = vmatprep.subr.bf16.mxu0 0
    %119 = vmatpush1.bf16.msra.mxu0 %v88
    %120 = vmatprep.subr.bf16.mxu0 0
    %121 = vmatpush2.bf16.msra.mxu0 0
    %122 = vmatprep.subr.bf16.mxu0 0
    %123 = vmatpush2.bf16.msra.mxu0 0
    %124 = vmatprep.subr.bf16.mxu0 0
    %125 = vmatpush2.bf16.msra.mxu0 0
    %126 = vmatprep.subr.bf16.mxu0 0
    %127 = vmatpush2.bf16.msra.mxu0 0
    %128 = vmatprep.subr.bf16.mxu0 0
    %129 = vmatpush2.bf16.msra.mxu0 0
    %130 = vmatprep.subr.bf16.mxu0 0
    %131 = vmatpush2.bf16.msra.mxu0 0
    %132 = vmatprep.subr.bf16.mxu0 0
    %133 = vmatpush2.bf16.msra.mxu0 0
    %134 = vmatprep.subr.bf16.mxu0 0
    %135 = vmatpush2.bf16.msra.mxu0 0
    %136 = vmatprep.mubr.bf16.mxu0 0
    %137 = vmatmul.mubr.bf16.gmra.mxu0 %v39
    %v138 = vpop.f32.mrf.mxu0
    %v139 = vadd.f32 0.0, %v138
    %v140 = vpop.f32.mrf.mxu0
    %v141 = vpop.f32.mrf.mxu0
    %v142 = vpop.f32.mrf.mxu0
    %143 = vdwg.mxu0
    %v144 = vlaneseq
    %v145 = vand.u32 %v144, 127
    %vm146 = vcmp.lt.s32.totalorder %v145, 16
    %v147 = vsel %vm146, %v139, -inf
    %148 = vmax.xlane.f32.xlu0 %v147
    %v149 = vpop.xlane.xlu0 %148
    %v150 = vsub.f32 %v147, %v149
    %v151 = vmul.f32 %v150, 1.442695
    %v152 = vpow.pop %v151
    %153 = vadd.xlane.f32.xlu0 %v152
    %v154 = vpop.xlane.xlu0 %153
    %v155 = vlog2.pop %v154
    %v156 = vmul.f32 %v155, 0.6931472
    %v157 = vsub.f32 %v150, %v156
    %158 = vst [vmem:[#allocation7] sm:$0xff] %v157
    // Predicated region
    $region18: #{tpu_custom_call.1} parent=1 // pred_check
      _
    $region19: #{tpu_custom_call.1} parent=1 // pred_check_branch
      %160 = sbr.rel (0) target = $region21
    $region20: #{tpu_custom_call.1} parent=1 // pred_region
      %s162 = ssub.s32 128, 128
      %163 = vsyncadd [#allocation4], %s162
      %s165 = sshll.u32 [#allocation7], 4
      %s166 = int_to_ptr.vmem [resolvable:$true] %s165
      %168 = dma.vmem_to_hbm [thread:$0]  %s166, 128, %s2, [#allocation4]
    $region21: #{tpu_custom_call.1} parent=1 // pred_fallthru
      _
    // Predicated region
    $region22: #{tpu_custom_call.1} parent=1 // pred_check
      _
    $region23: #{tpu_custom_call.1} parent=1 // pred_check_branch
      %170 = sbr.rel (0) target = $region25
    $region24: #{tpu_custom_call.1} parent=1 // pred_region
      %171 = dma.done [#allocation4], 128
    $region25: #{tpu_custom_call.1} parent=1 // pred_fallthru
      _
    %172 = vsyncpa [#allocation3], 1
    %173 = vsyncpa [#allocation6], 1
    %174 = vsyncpa [#allocation4], 1

</llo_original>
